<compile_context>
chip_gen: v7x
topology: tpu7x:2x2x1
jax: 0.10.0
libtpu: 0.0.40
codegen_flags: <defaults>
</compile_context>

<pallas_src>
import functools

import jax
import jax.numpy as jnp
from jax.experimental import pallas as pl
from jax.experimental.pallas import tpu as pltpu


def _sta_kernel(q_ref, kt_ref, v_ref, st_ref, gamma_ref,
                o_ref,
                acc_ref, m_ref, l_ref,
                *, tkv, n_valid):
    ki = pl.program_id(2)
    nk = pl.num_programs(2)

    @pl.when(ki == 0)
    def _init():
        acc_ref[...] = jnp.zeros_like(acc_ref)
        m_ref[...] = jnp.full_like(m_ref, -jnp.inf)
        l_ref[...] = jnp.zeros_like(l_ref)

    # Transposed energy tile: eT[j, i] = k[:, j] . q[:, i] -> (TKV, TQ).
    # kT tile is (TKV, C8), q tile is (C8, TQ): natural (M,K)@(K,N), no
    # in-kernel transposes; contraction depth is C/8 (unfolded projections).
    eT = jnp.dot(kt_ref[...], q_ref[...], preferred_element_type=jnp.float32)

    # Mask padded kv keys (statically omitted when N % tkv == 0).
    if n_valid is not None:
        kv_idx = ki * tkv + jax.lax.broadcasted_iota(jnp.int32, (tkv, 1), 0)
        eT = jnp.where(kv_idx < n_valid, eT, -jnp.inf)

    # Online softmax over kv (sublane axis of eT); stats are (1, TQ) lane
    # vectors, so every broadcast onto eT / acc is a sublane broadcast.
    m_prev = m_ref[...]
    m_new = jnp.maximum(m_prev, jnp.max(eT, axis=0, keepdims=True))
    alpha = jnp.exp(m_prev - m_new)                        # (1, TQ)
    p = jnp.exp(eT - m_new)                                # (TKV, TQ), f32
    l_ref[...] = alpha * l_ref[...] + jnp.sum(p, axis=0, keepdims=True)
    acc_ref[...] = alpha * acc_ref[...] + jnp.dot(
        v_ref[...], p.astype(v_ref.dtype),
        preferred_element_type=jnp.float32)                # (C, TQ)
    m_ref[...] = m_new

    @pl.when(ki == nk - 1)
    def _finalize():
        # Fold gamma into the normalisation vector: one (1,TQ) scale, then a
        # single broadcast-mul + elementwise-mul on the (C,TQ) accumulator.
        scale = gamma_ref[0, 0] * pl.reciprocal(l_ref[...], approx=True)
        o_ref[...] = (acc_ref[...] * scale * st_ref[...]).astype(o_ref.dtype)


def _round_up(x, m):
    return -(-x // m) * m


def sta_module(s, t, st, params, *, tq=256, tkv=256, mxu_dtype=jnp.bfloat16,
               vmem_limit_bytes=48 * 1024 * 1024):
    """s, t, st: (B, C, H, W) float32 (NCHW). Returns (B, C, H, W).

    params = (wq, bq, wk, bk, wv, bv, gamma) in PyTorch Conv2d 1x1 layout:
      wq, wk: (C//8, C), wv: (C, C)  -> (out_channels, in_channels)
      bq, bk: (C//8,),   bv: (C,),   gamma: scalar.
    """
    wq, bq, wk, bk, wv, bv, gamma = params
    B, C, H, W = s.shape
    N = H * W
    f32 = jnp.float32

    # NCHW -> (B, C, N): free reshape (no transpose); N lands on the lane axis.
    s3 = s.reshape(B, C, N).astype(f32)
    t3 = t.reshape(B, C, N).astype(f32)
    st3 = st.reshape(B, C, N).astype(f32)

    # Hoisted 1x1-conv projections (one batched XLA matmul each, amortised
    # once per call instead of once per (q_tile, kv_tile) inner-loop step):
    #   q  = Wq s + bq            -> (B, C8, N)   (query stream)
    #   kT = (Wk t + bk)^T        -> (B, N, C8)   (key stream, pre-transposed)
    #   v  = Wv s + bv            -> (B, C,  N)   (value stream, bias folded in)
    q3 = jnp.einsum('oc,bcn->bon', wq.astype(f32), s3) + bq.astype(f32)[None, :, None]
    kT = jnp.einsum('bcn,oc->bno', t3, wk.astype(f32)) + bk.astype(f32)[None, None, :]
    v3 = jnp.einsum('oc,bcn->bon', wv.astype(f32), s3) + bv.astype(f32)[None, :, None]
    C8 = q3.shape[1]

    # Cast MXU operand streams once in the wrapper (halves kv-stream HBM bytes
    # on the bf16 path).  st / stats / accumulator / epilogue stay f32.
    q3 = q3.astype(mxu_dtype)
    kT = kT.astype(mxu_dtype)
    v3 = v3.astype(mxu_dtype)

    g2 = jnp.asarray(gamma, f32).reshape(1, 1)

    # Tile plan: lane dims must be multiples of 128; pad N instead of falling
    # back to a full-extent (O(N^2)) tile.
    tq = max(128, _round_up(tq, 128))
    tkv = max(128, _round_up(tkv, 128))
    tq = min(tq, _round_up(N, 128))
    tkv = min(tkv, _round_up(N, 128))
    Nq = _round_up(N, tq)
    Nkv = _round_up(N, tkv)

    if Nq != N:       # padded query columns -> finite garbage, sliced off below
        q3 = jnp.pad(q3, ((0, 0), (0, 0), (0, Nq - N)))
        st3 = jnp.pad(st3, ((0, 0), (0, 0), (0, Nq - N)))
    if Nkv != N:      # padded keys -> masked to -inf inside the kernel
        kT = jnp.pad(kT, ((0, 0), (0, Nkv - N), (0, 0)))
        v3 = jnp.pad(v3, ((0, 0), (0, 0), (0, Nkv - N)))

    grid = (B, Nq // tq, Nkv // tkv)
    kernel = functools.partial(_sta_kernel, tkv=tkv,
                               n_valid=(N if Nkv != N else None))

    # TODO(synk): profile-guided follow-ups -- pl.Buffered(3) on the kv-stream
    # specs if DMA is exposed at small C, and fp8 p-operand on v7x.
    out3 = pl.pallas_call(
        kernel,
        out_shape=jax.ShapeDtypeStruct((B, C, Nq), s.dtype),
        grid_spec=pltpu.PrefetchScalarGridSpec(
            num_scalar_prefetch=0,
            grid=grid,
            in_specs=[
                pl.BlockSpec((None, C8, tq), lambda b, qi, ki: (b, 0, qi)),   # q  (q tile)
                pl.BlockSpec((None, tkv, C8), lambda b, qi, ki: (b, ki, 0)),  # kT (kv tile)
                pl.BlockSpec((None, C, tkv), lambda b, qi, ki: (b, 0, ki)),   # v  (kv tile)
                pl.BlockSpec((None, C, tq), lambda b, qi, ki: (b, 0, qi)),    # st (q tile)
                pl.BlockSpec(memory_space=pltpu.MemorySpace.SMEM),            # gamma
            ],
            out_specs=pl.BlockSpec((None, C, tq), lambda b, qi, ki: (b, 0, qi)),
            scratch_shapes=[
                pltpu.VMEM((C, tq), jnp.float32),   # acc (unnormalised output)
                pltpu.VMEM((1, tq), jnp.float32),   # m   (running max)
                pltpu.VMEM((1, tq), jnp.float32),   # l   (running sum)
            ],
        ),
        compiler_params=pltpu.CompilerParams(
            dimension_semantics=("parallel", "parallel", "arbitrary"),
            vmem_limit_bytes=vmem_limit_bytes,
        ),
    )(q3, kT, v3, st3, g2)

    return out3[:, :, :N].reshape(B, C, H, W)


def sta_reference(s, t, st, params):
    """Pure-JAX mirror of the PyTorch STA_Module.forward."""
    wq, bq, wk, bk, wv, bv, gamma = params
    B, C, H, W = s.shape
    N = H * W
    s3 = s.reshape(B, C, N)
    t3 = t.reshape(B, C, N)
    q = jnp.einsum('oc,bcn->bon', wq, s3) + bq[None, :, None]    # (B, C8, N)
    k = jnp.einsum('oc,bcn->bon', wk, t3) + bk[None, :, None]    # (B, C8, N)
    v = jnp.einsum('oc,bcn->bon', wv, s3) + bv[None, :, None]    # (B, C,  N)
    energy = jnp.einsum('bci,bcj->bij', q, k)                    # (B, N, N)
    attn = jax.nn.softmax(energy, axis=-1)
    out = jnp.einsum('bcj,bij->bci', v, attn)                    # (B, C, N)
    return gamma * out.reshape(B, C, H, W) * st


if __name__ == "__main__":
    key = jax.random.PRNGKey(0)
    B, C = 2, 16
    C8 = C // 8

    kp = jax.random.split(key, 6)
    # Conv2d 1x1 weights in PyTorch (out_channels, in_channels) layout.
    wq = jax.random.normal(kp[0], (C8, C), jnp.float32) * 0.1
    bq = jax.random.normal(kp[1], (C8,), jnp.float32) * 0.1
    wk = jax.random.normal(kp[2], (C8, C), jnp.float32) * 0.1
    bk = jax.random.normal(kp[3], (C8,), jnp.float32) * 0.1
    wv = jax.random.normal(kp[4], (C, C), jnp.float32) * 0.1
    bv = jax.random.normal(kp[5], (C,), jnp.float32) * 0.1
    # PyTorch initialises gamma to 0 (output identically zero); use a nonzero
    # value so the full compute path is exercised.
    gamma = jnp.float32(0.5)
    params = (wq, bq, wk, bk, wv, bv, gamma)

    # Two spatial sizes: N=256 (exact single 256-tile) and N=400 (q padding +
    # masked last kv tile path).
    for (H, W) in [(16, 16), (20, 20)]:
        kd = jax.random.fold_in(key, H)
        kd = jax.random.split(kd, 3)
        s = jax.random.normal(kd[0], (B, C, H, W), jnp.float32)
        t = jax.random.normal(kd[1], (B, C, H, W), jnp.float32)
        st = jax.random.normal(kd[2], (B, C, H, W), jnp.float32)

        ref = sta_reference(s, t, st, params)

        # f32 MXU operands (exact path up to tiling reassociation / approx recip).
        out_f32 = jax.block_until_ready(
            sta_module(s, t, st, params, mxu_dtype=jnp.float32))
        assert out_f32.shape == (B, C, H, W)
        err32 = float(jnp.max(jnp.abs(out_f32 - ref)))
        assert jnp.allclose(out_f32, ref, rtol=1e-2, atol=1e-2), (H, W, err32)

        # bf16 MXU operands (fast path on all generations); stats/acc/epilogue f32.
        out_bf16 = jax.block_until_ready(
            sta_module(s, t, st, params, mxu_dtype=jnp.bfloat16))
        errbf = float(jnp.max(jnp.abs(out_bf16 - ref)))
        assert jnp.allclose(out_bf16, ref, rtol=5e-2, atol=5e-2), (H, W, errbf)

    print("KERNEL_OK")
</pallas_src>

<mosaic_0001>
module attributes {stable_mosaic.version = 11 : i64} {
  func.func @_sta_kernel(%arg0: i32, %arg1: i32, %arg2: i32, %arg3: memref<1x2x256xf32, #tpu.memory_space<vmem>>, %arg4: memref<1x256x2xf32, #tpu.memory_space<vmem>>, %arg5: memref<1x16x256xf32, #tpu.memory_space<vmem>>, %arg6: memref<1x16x256xf32, #tpu.memory_space<vmem>>, %arg7: memref<1x1xf32, #tpu.memory_space<smem>>, %arg8: memref<1x16x256xf32, #tpu.memory_space<vmem>>, %arg9: memref<16x256xf32, #tpu.memory_space<vmem>>, %arg10: memref<1x256xf32, #tpu.memory_space<vmem>>, %arg11: memref<1x256xf32, #tpu.memory_space<vmem>>) attributes {dimension_semantics = [#tpu.dimension_semantics<parallel>, #tpu.dimension_semantics<parallel>, #tpu.dimension_semantics<arbitrary>], iteration_bounds = array<i64: 2, 1, 1>, scalar_prefetch = 0 : i64, scratch_operands = 3 : i64, tpu.core_type = #tpu.core_type<tc>, window_params = [{transform_indices = @transform_0, window_bounds = array<i64: 1, 2, 256>}, {transform_indices = @transform_1, window_bounds = array<i64: 1, 256, 2>}, {transform_indices = @transform_2, window_bounds = array<i64: 1, 16, 256>}, {transform_indices = @transform_3, window_bounds = array<i64: 1, 16, 256>}, {transform_indices = @transform_4, window_bounds = array<i64: 1, 1>}, {transform_indices = @transform_5, window_bounds = array<i64: 1, 16, 256>}]} {
    %c0_i32 = arith.constant 0 : i32
    %0 = arith.cmpi eq, %arg2, %c0_i32 : i32
    %1 = arith.extui %0 : i1 to i32
    %c0_i32_0 = arith.constant 0 : i32
    %2 = arith.cmpi ne, %1, %c0_i32_0 : i32
    scf.if %2 {
      %cst_26 = arith.constant 0.000000e+00 : f32
      %35 = vector.broadcast %cst_26 : f32 to vector<16x256xf32>
      %c0_27 = arith.constant 0 : index
      %c0_28 = arith.constant 0 : index
      %36 = vector.load %arg9[%c0_27, %c0_28] : memref<16x256xf32, #tpu.memory_space<vmem>>, vector<16x256xf32>
      tpu.vector_store %arg9[%c0_27, %c0_28], %35 {strides = array<i32>} : memref<16x256xf32, #tpu.memory_space<vmem>>, vector<16x256xf32>,
      %cst_29 = arith.constant 0xFF800000 : f32
      %37 = vector.broadcast %cst_29 : f32 to vector<1x256xf32>
      %c0_30 = arith.constant 0 : index
      %c0_31 = arith.constant 0 : index
      %38 = vector.load %arg10[%c0_30, %c0_31] : memref<1x256xf32, #tpu.memory_space<vmem>>, vector<1x256xf32>
      tpu.vector_store %arg10[%c0_30, %c0_31], %37 {strides = array<i32>} : memref<1x256xf32, #tpu.memory_space<vmem>>, vector<1x256xf32>,
      %cst_32 = arith.constant 0.000000e+00 : f32
      %39 = vector.broadcast %cst_32 : f32 to vector<1x256xf32>
      %c0_33 = arith.constant 0 : index
      %c0_34 = arith.constant 0 : index
      %40 = vector.load %arg11[%c0_33, %c0_34] : memref<1x256xf32, #tpu.memory_space<vmem>>, vector<1x256xf32>
      tpu.vector_store %arg11[%c0_33, %c0_34], %39 {strides = array<i32>} : memref<1x256xf32, #tpu.memory_space<vmem>>, vector<1x256xf32>,
    } else {
    }
    %c0 = arith.constant 0 : index
    %c0_1 = arith.constant 0 : index
    %c0_2 = arith.constant 0 : index
    %3 = vector.load %arg4[%c0, %c0_1, %c0_2] : memref<1x256x2xf32, #tpu.memory_space<vmem>>, vector<1x256x2xf32>
    %4 = vector.shape_cast %3 : vector<1x256x2xf32> to vector<256x2xf32>
    %c0_3 = arith.constant 0 : index
    %c0_4 = arith.constant 0 : index
    %c0_5 = arith.constant 0 : index
    %5 = vector.load %arg3[%c0_3, %c0_4, %c0_5] : memref<1x2x256xf32, #tpu.memory_space<vmem>>, vector<1x2x256xf32>
    %6 = vector.shape_cast %5 : vector<1x2x256xf32> to vector<2x256xf32>
    %cst = arith.constant dense<0.000000e+00> : vector<256x256xf32>
    %7 = tpu.matmul %4, %6, %cst {dimension_numbers = #tpu.dot_dimension_numbers<[1], [0], [0], [1], [0, 0, 1, 1], [], []>} : vector<256x2xf32>, vector<2x256xf32>, vector<256x256xf32> -> vector<256x256xf32>
    %c0_6 = arith.constant 0 : index
    %c0_7 = arith.constant 0 : index
    %8 = vector.load %arg10[%c0_6, %c0_7] : memref<1x256xf32, #tpu.memory_space<vmem>>, vector<1x256xf32>
    %cst_8 = arith.constant dense<0xFF800000> : vector<256xf32>
    %9 = vector.multi_reduction <maximumf>, %7, %cst_8 [0] : vector<256x256xf32> to vector<256xf32>
    %10 = vector.shape_cast %9 : vector<256xf32> to vector<1x256xf32>
    %11 = arith.maximumf %8, %10 : vector<1x256xf32>
    %12 = arith.subf %8, %11 : vector<1x256xf32>
    %13 = math.exp %12 : vector<1x256xf32>
    %14 = vector.broadcast %11 : vector<1x256xf32> to vector<256x256xf32>
    %15 = arith.subf %7, %14 : vector<256x256xf32>
    %16 = math.exp %15 : vector<256x256xf32>
    %c0_9 = arith.constant 0 : index
    %c0_10 = arith.constant 0 : index
    %17 = vector.load %arg11[%c0_9, %c0_10] : memref<1x256xf32, #tpu.memory_space<vmem>>, vector<1x256xf32>
    %18 = arith.mulf %13, %17 : vector<1x256xf32>
    %cst_11 = arith.constant dense<0.000000e+00> : vector<256xf32>
    %19 = vector.multi_reduction <add>, %16, %cst_11 [0] : vector<256x256xf32> to vector<256xf32>
    %20 = vector.shape_cast %19 : vector<256xf32> to vector<1x256xf32>
    %21 = arith.addf %18, %20 : vector<1x256xf32>
    %c0_12 = arith.constant 0 : index
    %c0_13 = arith.constant 0 : index
    %22 = vector.load %arg11[%c0_12, %c0_13] : memref<1x256xf32, #tpu.memory_space<vmem>>, vector<1x256xf32>
    tpu.vector_store %arg11[%c0_12, %c0_13], %21 {strides = array<i32>} : memref<1x256xf32, #tpu.memory_space<vmem>>, vector<1x256xf32>,
    %c0_14 = arith.constant 0 : index
    %c0_15 = arith.constant 0 : index
    %23 = vector.load %arg9[%c0_14, %c0_15] : memref<16x256xf32, #tpu.memory_space<vmem>>, vector<16x256xf32>
    %24 = vector.broadcast %13 : vector<1x256xf32> to vector<16x256xf32>
    %25 = arith.mulf %24, %23 : vector<16x256xf32>
    %c0_16 = arith.constant 0 : index
    %c0_17 = arith.constant 0 : index
    %c0_18 = arith.constant 0 : index
    %26 = vector.load %arg5[%c0_16, %c0_17, %c0_18] : memref<1x16x256xf32, #tpu.memory_space<vmem>>, vector<1x16x256xf32>
    %27 = vector.shape_cast %26 : vector<1x16x256xf32> to vector<16x256xf32>
    %cst_19 = arith.constant dense<0.000000e+00> : vector<16x256xf32>
    %28 = tpu.matmul %27, %16, %cst_19 {dimension_numbers = #tpu.dot_dimension_numbers<[1], [0], [0], [1], [0, 0, 1, 1], [], []>} : vector<16x256xf32>, vector<256x256xf32>, vector<16x256xf32> -> vector<16x256xf32>
    %29 = arith.addf %25, %28 : vector<16x256xf32>
    %c0_20 = arith.constant 0 : index
    %c0_21 = arith.constant 0 : index
    %30 = vector.load %arg9[%c0_20, %c0_21] : memref<16x256xf32, #tpu.memory_space<vmem>>, vector<16x256xf32>
    tpu.vector_store %arg9[%c0_20, %c0_21], %29 {strides = array<i32>} : memref<16x256xf32, #tpu.memory_space<vmem>>, vector<16x256xf32>,
    %c0_22 = arith.constant 0 : index
    %c0_23 = arith.constant 0 : index
    %31 = vector.load %arg10[%c0_22, %c0_23] : memref<1x256xf32, #tpu.memory_space<vmem>>, vector<1x256xf32>
    tpu.vector_store %arg10[%c0_22, %c0_23], %11 {strides = array<i32>} : memref<1x256xf32, #tpu.memory_space<vmem>>, vector<1x256xf32>,
    %c0_i32_24 = arith.constant 0 : i32
    %32 = arith.cmpi eq, %arg2, %c0_i32_24 : i32
    %33 = arith.extui %32 : i1 to i32
    %c0_i32_25 = arith.constant 0 : i32
    %34 = arith.cmpi ne, %33, %c0_i32_25 : i32
    scf.if %34 {
      %c0_26 = arith.constant 0 : index
      %c0_27 = arith.constant 0 : index
      %35 = memref.load %arg7[%c0_26, %c0_27] : memref<1x1xf32, #tpu.memory_space<smem>>
      %c0_28 = arith.constant 0 : index
      %c0_29 = arith.constant 0 : index
      %36 = vector.load %arg11[%c0_28, %c0_29] : memref<1x256xf32, #tpu.memory_space<vmem>>, vector<1x256xf32>
      %37 = tpu.reciprocal %36 {approx = true} : vector<1x256xf32> -> vector<1x256xf32>
      %38 = vector.broadcast %35 : f32 to vector<1x256xf32>
      %39 = arith.mulf %38, %37 : vector<1x256xf32>
      %c0_30 = arith.constant 0 : index
      %c0_31 = arith.constant 0 : index
      %40 = vector.load %arg9[%c0_30, %c0_31] : memref<16x256xf32, #tpu.memory_space<vmem>>, vector<16x256xf32>
      %41 = vector.broadcast %39 : vector<1x256xf32> to vector<16x256xf32>
      %42 = arith.mulf %40, %41 : vector<16x256xf32>
      %c0_32 = arith.constant 0 : index
      %c0_33 = arith.constant 0 : index
      %c0_34 = arith.constant 0 : index
      %43 = vector.load %arg6[%c0_32, %c0_33, %c0_34] : memref<1x16x256xf32, #tpu.memory_space<vmem>>, vector<1x16x256xf32>
      %44 = vector.shape_cast %43 : vector<1x16x256xf32> to vector<16x256xf32>
      %45 = arith.mulf %42, %44 : vector<16x256xf32>
      %c0_35 = arith.constant 0 : index
      %c0_36 = arith.constant 0 : index
      %c0_37 = arith.constant 0 : index
      %46 = vector.load %arg8[%c0_35, %c0_36, %c0_37] : memref<1x16x256xf32, #tpu.memory_space<vmem>>, vector<1x16x256xf32>
      %47 = vector.shape_cast %46 : vector<1x16x256xf32> to vector<16x256xf32>
      %48 = vector.shape_cast %45 : vector<16x256xf32> to vector<1x16x256xf32>
      tpu.vector_store %arg8[%c0_35, %c0_36, %c0_37], %48 {strides = array<i32>} : memref<1x16x256xf32, #tpu.memory_space<vmem>>, vector<1x16x256xf32>,
    } else {
    }
    return
  }
  func.func @transform_0(%arg0: i32, %arg1: i32, %arg2: i32) -> (i32, i32, i32) {
    %c0_i32 = arith.constant 0 : i32
    %c0_i32_0 = arith.constant 0 : i32
    return %arg0, %c0_i32, %arg1 : i32, i32, i32
  }
  func.func @transform_1(%arg0: i32, %arg1: i32, %arg2: i32) -> (i32, i32, i32) {
    %c0_i32 = arith.constant 0 : i32
    %c0_i32_0 = arith.constant 0 : i32
    return %arg0, %arg2, %c0_i32 : i32, i32, i32
  }
  func.func @transform_2(%arg0: i32, %arg1: i32, %arg2: i32) -> (i32, i32, i32) {
    %c0_i32 = arith.constant 0 : i32
    %c0_i32_0 = arith.constant 0 : i32
    return %arg0, %c0_i32, %arg2 : i32, i32, i32
  }
  func.func @transform_3(%arg0: i32, %arg1: i32, %arg2: i32) -> (i32, i32, i32) {
    %c0_i32 = arith.constant 0 : i32
    %c0_i32_0 = arith.constant 0 : i32
    return %arg0, %c0_i32, %arg1 : i32, i32, i32
  }
  func.func @transform_4(%arg0: i32, %arg1: i32, %arg2: i32) -> (i32, i32) {
    %c0_i32 = arith.constant 0 : i32
    %c0_i32_0 = arith.constant 0 : i32
    %c0_i32_1 = arith.constant 0 : i32
    return %c0_i32, %c0_i32_0 : i32, i32
  }
  func.func @transform_5(%arg0: i32, %arg1: i32, %arg2: i32) -> (i32, i32, i32) {
    %c0_i32 = arith.constant 0 : i32
    %c0_i32_0 = arith.constant 0 : i32
    return %arg0, %c0_i32, %arg1 : i32, i32, i32
  }
}

</mosaic_0001>

<llo_original>
// kernel: tpu_custom_call.1
$region0: #{tpu_custom_call.1}
  #allocation0 [shape = 'u32[]', space=smem, size = 0x4, offset = 0x4, fixed_abs, tag = 'smem constant byte address 0x4 - core index']
  #allocation1 [shape = 'u32[144,128]{1,0:T(1,128)}', space=vmem, size = 0x12000, scoped, tag = 'internal scratch']
  #allocation2 [shape = 'f32[16,256]{1,0:T(8,128)}', space=vmem, size = 0x4000, scoped, tag = 'scratch operand']
  #allocation3 [shape = 'f32[1,256]{1,0:T(1,128)}', space=vmem, size = 0x400, scoped, tag = 'scratch operand']
  #allocation4 [shape = 'f32[1,256]{1,0:T(1,128)}', space=vmem, size = 0x400, scoped, tag = 'scratch operand']
  #allocation5 [shape = 'f32[1,1]{1,0:T(1,128)S(6)}', space=smem, size = 0x200, scoped, tag = 'scoped memory for tpu_custom_call.1']
  %s0 = inlined_call_operand.vmem [shape: f32[2,2,256], index: 0, kind: input, shape index: {}]
  %s1 = inlined_call_operand.vmem [shape: f32[2,256,2], index: 1, kind: input, shape index: {}]
  %s2 = inlined_call_operand.vmem [shape: f32[2,16,256], index: 2, kind: input, shape index: {}]
  %s3 = inlined_call_operand.vmem [shape: f32[2,16,256], index: 3, kind: input, shape index: {}]
  %s4 = inlined_call_operand.<no memory space> [shape: f32[1,1], index: 4, kind: input, shape index: {}]
  %s5 = inlined_call_operand.hbm [shape: f32[2,16,256], index: 5, kind: output, shape index: {}]
  %s6 = sld [smem:[#allocation0]]
  $region61: #{tpu_custom_call.1} parent=0
    _
  %s8 = ssub.s32 1, %s6
  %s9 = scalar_select 0, %s8, %s6
  %10 = sst [smem:[#allocation5]] %s4
  $region1: #{tpu_custom_call.1} parent=0
    #allocation6 [shape = 'u8[32768]{0}', space=vmem, size = 0x8000, scoped, tag = 'output window, operand 0']
    #allocation7 [shape = 's32[2]{0}', space=sflag, size = 0x8, scoped, tag = 'scoped memory for tpu_custom_call.1']
    %11 = vsyncpa [#allocation7], 0
    %s12 = scalar_lea.sflag [#allocation7], 1
    %13 = vsyncpa %s12, 0
    loop: start=0, step=1, limit=4
    $region2: #{tpu_custom_call.1} parent=1 // loop_pre_header
      _
    $region3: #{tpu_custom_call.1} parent=1 // loop_header
      %s15 = sphi 0, %s19
      %p16 = scmp.ge.s32.totalorder %s15, 4
      %s22 = sphi 0, %s41
      %s23 = sphi 0, %s37
      %s24 = sphi 0, %s33
      %s25 = sphi 0, %s22
      %s26 = sphi 0, %s23
      %s27 = sphi 0, %s24
      %s28 = sphi 0, %s25
      %s29 = sphi 0, %s26
      %s30 = sphi 0, %s27
      %s46 = sphi 0, %s48
      %s49 = sphi 0, %s46
      %s50 = sphi 0, %s49
      %s66 = sphi 0, %s50
      %s74 = sphi 0, %s76
      %s77 = sphi 0, %s74
      %s78 = sphi 0, %s77
      %s94 = sphi 0, %s78
      %s102 = sphi 0, %s104
      %s105 = sphi 0, %s102
      %s106 = sphi 0, %s105
      %s122 = sphi 0, %s106
      %s130 = sphi 0, %s132
      %s133 = sphi 0, %s130
      %s134 = sphi 0, %s133
      %s150 = sphi 0, %s134
      %s154 = sphi 0, %s154
      %s156 = sphi 0, %s154
      %s157 = sphi 0, %s156
      %s171 = sphi 0, %s157
      %s179 = sphi 0, %s181
      %s182 = sphi 0, %s179
      %s183 = sphi 0, %s182
      %s199 = sphi 0, %s183
    $region4: #{tpu_custom_call.1} parent=1 // loop_header_branch
      %18 = sbr.rel (%p16) target = $region8
    $region5: #{tpu_custom_call.1} parent=1 // loop_body
      %s20 = ssub.s32 %s15, 1
      %s21 = ssub.s32 %s15, 2
      %s31 = sadd.s32 1, %s24
      %p32 = scmp.ge.s32.totalorder %s31, 1
      %s33 = scalar_select %p32, 0, %s31
      %s34 = sadd.s32 1, %s23
      %s35 = scalar_select %p32, %s34, %s23
      %p36 = scmp.ge.s32.totalorder %s35, 1
      %s37 = scalar_select %p36, 0, %s35
      %s38 = sadd.s32 1, %s22
      %s39 = scalar_select %p36, %s38, %s22
      %p40 = scmp.ge.s32.totalorder %s39, 2
      %s41 = scalar_select %p40, 0, %s39
      %s42 = ssub.s32 %s22, %s41
      %s43 = ssub.s32 %s23, %s37
      %s44 = sor.u32 %s42, %s43
      %p45 = scmp.eq.s32.totalorder %s44, 0
      %s47 = sadd.s32 %s46, 1
      %s48 = scalar_select %p45, %s46, %s47
      %p51 = pneg %p45
      %p52 = scmp.eq.s32.totalorder %s15, 1
      %p53 = por %p51, %p52
      %p54 = scmp.ne.s32.totalorder %s46, %s49
      %p55 = scmp.eq.s32.totalorder %s15, 0
      %p56 = por %p54, %p55
      %p57 = scmp.ne.s32.totalorder %s46, %s49
      %p58 = scmp.eq.s32.totalorder %s20, 1
      %p59 = por %p57, %p58
      %p60 = scmp.ne.s32.totalorder %s49, %s50
      %p61 = scmp.eq.s32.totalorder %s20, 0
      %p62 = por %p60, %p61
      %p63 = scmp.ne.s32.totalorder %s49, %s50
      %p64 = scmp.eq.s32.totalorder %s21, 1
      %p65 = por %p63, %p64
      %p67 = scmp.ne.s32.totalorder %s50, %s66
      %p68 = scmp.eq.s32.totalorder %s21, 0
      %p69 = por %p67, %p68
      %s70 = ssub.s32 %s22, %s41
      %s71 = ssub.s32 %s24, %s33
      %s72 = sor.u32 %s70, %s71
      %p73 = scmp.eq.s32.totalorder %s72, 0
      %s75 = sadd.s32 %s74, 1
      %s76 = scalar_select %p73, %s74, %s75
      %p79 = pneg %p73
      %p80 = scmp.eq.s32.totalorder %s15, 1
      %p81 = por %p79, %p80
      %p82 = scmp.ne.s32.totalorder %s74, %s77
      %p83 = scmp.eq.s32.totalorder %s15, 0
      %p84 = por %p82, %p83
      %p85 = scmp.ne.s32.totalorder %s74, %s77
      %p86 = scmp.eq.s32.totalorder %s20, 1
      %p87 = por %p85, %p86
      %p88 = scmp.ne.s32.totalorder %s77, %s78
      %p89 = scmp.eq.s32.totalorder %s20, 0
      %p90 = por %p88, %p89
      %p91 = scmp.ne.s32.totalorder %s77, %s78
      %p92 = scmp.eq.s32.totalorder %s21, 1
      %p93 = por %p91, %p92
      %p95 = scmp.ne.s32.totalorder %s78, %s94
      %p96 = scmp.eq.s32.totalorder %s21, 0
      %p97 = por %p95, %p96
      %s98 = ssub.s32 %s22, %s41
      %s99 = ssub.s32 %s24, %s33
      %s100 = sor.u32 %s98, %s99
      %p101 = scmp.eq.s32.totalorder %s100, 0
      %s103 = sadd.s32 %s102, 1
      %s104 = scalar_select %p101, %s102, %s103
      %p107 = pneg %p101
      %p108 = scmp.eq.s32.totalorder %s15, 1
      %p109 = por %p107, %p108
      %p110 = scmp.ne.s32.totalorder %s102, %s105
      %p111 = scmp.eq.s32.totalorder %s15, 0
      %p112 = por %p110, %p111
      %p113 = scmp.ne.s32.totalorder %s102, %s105
      %p114 = scmp.eq.s32.totalorder %s20, 1
      %p115 = por %p113, %p114
      %p116 = scmp.ne.s32.totalorder %s105, %s106
      %p117 = scmp.eq.s32.totalorder %s20, 0
      %p118 = por %p116, %p117
      %p119 = scmp.ne.s32.totalorder %s105, %s106
      %p120 = scmp.eq.s32.totalorder %s21, 1
      %p121 = por %p119, %p120
      %p123 = scmp.ne.s32.totalorder %s106, %s122
      %p124 = scmp.eq.s32.totalorder %s21, 0
      %p125 = por %p123, %p124
      %s126 = ssub.s32 %s22, %s41
      %s127 = ssub.s32 %s23, %s37
      %s128 = sor.u32 %s126, %s127
      %p129 = scmp.eq.s32.totalorder %s128, 0
      %s131 = sadd.s32 %s130, 1
      %s132 = scalar_select %p129, %s130, %s131
      %p135 = pneg %p129
      %p136 = scmp.eq.s32.totalorder %s15, 1
      %p137 = por %p135, %p136
      %p138 = scmp.ne.s32.totalorder %s130, %s133
      %p139 = scmp.eq.s32.totalorder %s15, 0
      %p140 = por %p138, %p139
      %p141 = scmp.ne.s32.totalorder %s130, %s133
      %p142 = scmp.eq.s32.totalorder %s20, 1
      %p143 = por %p141, %p142
      %p144 = scmp.ne.s32.totalorder %s133, %s134
      %p145 = scmp.eq.s32.totalorder %s20, 0
      %p146 = por %p144, %p145
      %p147 = scmp.ne.s32.totalorder %s133, %s134
      %p148 = scmp.eq.s32.totalorder %s21, 1
      %p149 = por %p147, %p148
      %p151 = scmp.ne.s32.totalorder %s134, %s150
      %p152 = scmp.eq.s32.totalorder %s21, 0
      %p153 = por %p151, %p152
      %s155 = sadd.s32 %s154, 1
      %p158 = scmp.eq.s32.totalorder %s15, 1
      %p159 = scmp.ne.s32.totalorder %s154, %s156
      %p160 = scmp.eq.s32.totalorder %s15, 0
      %p161 = por %p159, %p160
      %p162 = scmp.ne.s32.totalorder %s154, %s156
      %p163 = scmp.eq.s32.totalorder %s20, 1
      %p164 = por %p162, %p163
      %p165 = scmp.ne.s32.totalorder %s156, %s157
      %p166 = scmp.eq.s32.totalorder %s20, 0
      %p167 = por %p165, %p166
      %p168 = scmp.ne.s32.totalorder %s156, %s157
      %p169 = scmp.eq.s32.totalorder %s21, 1
      %p170 = por %p168, %p169
      %p172 = scmp.ne.s32.totalorder %s157, %s171
      %p173 = scmp.eq.s32.totalorder %s21, 0
      %p174 = por %p172, %p173
      %s175 = ssub.s32 %s22, %s41
      %s176 = ssub.s32 %s23, %s37
      %s177 = sor.u32 %s175, %s176
      %p178 = scmp.eq.s32.totalorder %s177, 0
      %s180 = sadd.s32 %s179, 1
      %s181 = scalar_select %p178, %s179, %s180
      %p184 = pneg %p178
      %p185 = scmp.eq.s32.totalorder %s15, 1
      %p186 = por %p184, %p185
      %p187 = scmp.ne.s32.totalorder %s179, %s182
      %p188 = scmp.eq.s32.totalorder %s15, 0
      %p189 = por %p187, %p188
      %p190 = scmp.ne.s32.totalorder %s179, %s182
      %p191 = scmp.eq.s32.totalorder %s20, 1
      %p192 = por %p190, %p191
      %p193 = scmp.ne.s32.totalorder %s182, %s183
      %p194 = scmp.eq.s32.totalorder %s20, 0
      %p195 = por %p193, %p194
      %p196 = scmp.ne.s32.totalorder %s182, %s183
      %p197 = scmp.eq.s32.totalorder %s21, 1
      %p198 = por %p196, %p197
      %p200 = scmp.ne.s32.totalorder %s183, %s199
      %p201 = scmp.eq.s32.totalorder %s21, 0
      %p202 = por %p200, %p201
      %p203 = scmp.le.s32.totalorder 1, %s15
      %p204 = scmp.lt.s32.totalorder %s15, 3
      %p205 = pnand %p203, %p204
      %p206 = pneg %p205
      // Predicated region
      $region9: #{tpu_custom_call.1} parent=5 // pred_check
        _
      $region10: #{tpu_custom_call.1} parent=5 // pred_check_branch
        %208 = sbr.rel (%p205) target = $region12
      $region11: #{tpu_custom_call.1} parent=5 // pred_region
        %s209 = ssub.s32 %s15, 1
        // Predicated region
        $region13: #{tpu_custom_call.1} parent=11 // pred_check
          %p210 = pneg %p167
        $region14: #{tpu_custom_call.1} parent=11 // pred_check_branch
          %212 = sbr.rel (%p210) target = $region16
        $region15: #{tpu_custom_call.1} parent=11 // pred_region
          _
        $region16: #{tpu_custom_call.1} parent=11 // pred_fallthru
          _
      $region12: #{tpu_custom_call.1} parent=5 // pred_fallthru
        _
      %p213 = scmp.lt.s32.totalorder %s15, 2
      // Predicated region
      $region17: #{tpu_custom_call.1} parent=5 // pred_check
        %p214 = pneg %p213
      $region18: #{tpu_custom_call.1} parent=5 // pred_check_branch
        %216 = sbr.rel (%p214) target = $region20
      $region19: #{tpu_custom_call.1} parent=5 // pred_region
        // Predicated region
        $region21: #{tpu_custom_call.1} parent=19 // pred_check
          %p217 = pneg %p56
        $region22: #{tpu_custom_call.1} parent=19 // pred_check_branch
          %219 = sbr.rel (%p217) target = $region24
        $region23: #{tpu_custom_call.1} parent=19 // pred_region
          %s220 = smul.u32 2, %s23
          %p221 = scmp.lt.s32.totalorder %s22, 1
          %s222 = scalar_select %p221, %s22, 1
          %p223 = scmp.lt.s32.totalorder %s220, 1
          %s224 = scalar_select %p223, %s220, 1
          %s225 = smul.addr %s222, 2
          %s226 = sadd.s32 %s224, %s225
          %s227 = smul.addr %s226, 2
          %s228 = scalar_lea.vmem %s0, %s227
          %s229 = smul.u32 2, %s23
        $region24: #{tpu_custom_call.1} parent=19 // pred_fallthru
          _
        // Predicated region
        $region25: #{tpu_custom_call.1} parent=19 // pred_check
          %p230 = pneg %p84
        $region26: #{tpu_custom_call.1} parent=19 // pred_check_branch
          %232 = sbr.rel (%p230) target = $region28
        $region27: #{tpu_custom_call.1} parent=19 // pred_region
          %s233 = smul.u32 32, %s24
          %p234 = scmp.lt.s32.totalorder %s22, 1
          %s235 = scalar_select %p234, %s22, 1
          %p236 = scmp.lt.s32.totalorder %s233, 31
          %s237 = scalar_select %p236, %s233, 31
          %s238 = smul.addr %s235, 32
          %s239 = sadd.s32 %s237, %s238
          %s240 = smul.addr %s239, 8
          %s241 = scalar_lea.vmem %s1, %s240
          %s242 = smul.u32 32, %s24
        $region28: #{tpu_custom_call.1} parent=19 // pred_fallthru
          _
        // Predicated region
        $region29: #{tpu_custom_call.1} parent=19 // pred_check
          %p243 = pneg %p112
        $region30: #{tpu_custom_call.1} parent=19 // pred_check_branch
          %245 = sbr.rel (%p243) target = $region32
        $region31: #{tpu_custom_call.1} parent=19 // pred_region
          %s246 = smul.u32 2, %s24
          %p247 = scmp.lt.s32.totalorder %s22, 1
          %s248 = scalar_select %p247, %s22, 1
          %p249 = scmp.lt.s32.totalorder %s246, 1
          %s250 = scalar_select %p249, %s246, 1
          %s251 = smul.addr %s248, 4
          %s252 = sadd.s32 %s250, %s251
          %s253 = smul.addr %s252, 8
          %s254 = scalar_lea.vmem %s2, %s253
          %s255 = smul.u32 2, %s24
        $region32: #{tpu_custom_call.1} parent=19 // pred_fallthru
          _
        // Predicated region
        $region33: #{tpu_custom_call.1} parent=19 // pred_check
          %p256 = pneg %p140
        $region34: #{tpu_custom_call.1} parent=19 // pred_check_branch
          %258 = sbr.rel (%p256) target = $region36
        $region35: #{tpu_custom_call.1} parent=19 // pred_region
          %s259 = smul.u32 2, %s23
          %p260 = scmp.lt.s32.totalorder %s22, 1
          %s261 = scalar_select %p260, %s22, 1
          %p262 = scmp.lt.s32.totalorder %s259, 1
          %s263 = scalar_select %p262, %s259, 1
          %s264 = smul.addr %s261, 4
          %s265 = sadd.s32 %s263, %s264
          %s266 = smul.addr %s265, 8
          %s267 = scalar_lea.vmem %s3, %s266
          %s268 = smul.u32 2, %s23
        $region36: #{tpu_custom_call.1} parent=19 // pred_fallthru
          _
      $region20: #{tpu_custom_call.1} parent=5 // pred_fallthru
        _
      %p269 = scmp.le.s32.totalorder 1, %s15
      %p270 = scmp.lt.s32.totalorder %s15, 3
      %p271 = pnand %p269, %p270
      %p272 = pneg %p271
      // Predicated region
      $region37: #{tpu_custom_call.1} parent=5 // pred_check
        _
      $region38: #{tpu_custom_call.1} parent=5 // pred_check_branch
        %274 = sbr.rel (%p271) target = $region40
      $region39: #{tpu_custom_call.1} parent=5 // pred_region
        %s275 = ssub.s32 %s15, 1
        %s276 = smul.u32 2, %s26
        %p277 = scmp.lt.s32.totalorder %s25, 1
        %s278 = scalar_select %p277, %s25, 1
        %p279 = scmp.lt.s32.totalorder %s276, 1
        %s280 = scalar_select %p279, %s276, 1
        %s281 = smul.addr %s278, 2
        %s282 = sadd.s32 %s280, %s281
        %s283 = smul.addr %s282, 2
        %s284 = scalar_lea.vmem %s0, %s283
        %p285 = pneg %p62
        %p286 = pneg %p59
        %s287 = smul.u32 32, %s27
        %p288 = scmp.lt.s32.totalorder %s25, 1
        %s289 = scalar_select %p288, %s25, 1
        %p290 = scmp.lt.s32.totalorder %s287, 31
        %s291 = scalar_select %p290, %s287, 31
        %s292 = smul.addr %s289, 32
        %s293 = sadd.s32 %s291, %s292
        %s294 = smul.addr %s293, 8
        %s295 = scalar_lea.vmem %s1, %s294
        %p296 = pneg %p90
        %p297 = pneg %p87
        %s298 = smul.u32 2, %s27
        %p299 = scmp.lt.s32.totalorder %s25, 1
        %s300 = scalar_select %p299, %s25, 1
        %p301 = scmp.lt.s32.totalorder %s298, 1
        %s302 = scalar_select %p301, %s298, 1
        %s303 = smul.addr %s300, 4
        %s304 = sadd.s32 %s302, %s303
        %s305 = smul.addr %s304, 8
        %s306 = scalar_lea.vmem %s2, %s305
        %p307 = pneg %p118
        %p308 = pneg %p115
        %s309 = smul.u32 2, %s26
        %p310 = scmp.lt.s32.totalorder %s25, 1
        %s311 = scalar_select %p310, %s25, 1
        %p312 = scmp.lt.s32.totalorder %s309, 1
        %s313 = scalar_select %p312, %s309, 1
        %s314 = smul.addr %s311, 4
        %s315 = sadd.s32 %s313, %s314
        %s316 = smul.addr %s315, 8
        %s317 = scalar_lea.vmem %s3, %s316
        %p318 = pneg %p146
        %p319 = pneg %p143
        %p320 = pneg %p167
        %p321 = pneg %p164
        %p322 = pneg %p195
        %p323 = pneg %p192
        %s324 = sand.u32 %s182, 1
        %s325 = scalar_lea.sflag [#allocation7], %s324
        %s326 = sand.u32 %s182, 1
        %s327 = smul.addr %s326, 32
        %s328 = scalar_lea.vmem [#allocation6], %s327
        %s329 = smul.u32 2, %s26
        %p330 = scmp.lt.s32.totalorder %s25, 1
        %s331 = scalar_select %p330, %s25, 1
        %p332 = scmp.lt.s32.totalorder %s329, 1
        %s333 = scalar_select %p332, %s329, 1
        %s334 = smul.addr %s331, 2
        %s335 = sadd.s32 %s333, %s334
        %s336 = smul.addr %s335, 2
        %s337 = scalar_lea.vmem %s0, %s336
        %s338 = smul.u32 2, %s26
        %s339 = smul.u32 32, %s27
        %p340 = scmp.lt.s32.totalorder %s25, 1
        %s341 = scalar_select %p340, %s25, 1
        %p342 = scmp.lt.s32.totalorder %s339, 31
        %s343 = scalar_select %p342, %s339, 31
        %s344 = smul.addr %s341, 32
        %s345 = sadd.s32 %s343, %s344
        %s346 = smul.addr %s345, 8
        %s347 = scalar_lea.vmem %s1, %s346
        %s348 = smul.u32 32, %s27
        %s349 = smul.u32 2, %s27
        %p350 = scmp.lt.s32.totalorder %s25, 1
        %s351 = scalar_select %p350, %s25, 1
        %p352 = scmp.lt.s32.totalorder %s349, 1
        %s353 = scalar_select %p352, %s349, 1
        %s354 = smul.addr %s351, 4
        %s355 = sadd.s32 %s353, %s354
        %s356 = smul.addr %s355, 8
        %s357 = scalar_lea.vmem %s2, %s356
        %s358 = smul.u32 2, %s27
        %s359 = smul.u32 2, %s26
        %p360 = scmp.lt.s32.totalorder %s25, 1
        %s361 = scalar_select %p360, %s25, 1
        %p362 = scmp.lt.s32.totalorder %s359, 1
        %s363 = scalar_select %p362, %s359, 1
        %s364 = smul.addr %s361, 4
        %s365 = sadd.s32 %s363, %s364
        %s366 = smul.addr %s365, 8
        %s367 = scalar_lea.vmem %s3, %s366
        %s368 = smul.u32 2, %s26
        %s369 = smul.u32 2, %s26
        %p370 = scmp.eq.s32.totalorder %s27, 0
        // Predicated region
        $region41: #{tpu_custom_call.1} parent=39 // pred_check
          %p371 = pneg %p370
        $region42: #{tpu_custom_call.1} parent=39 // pred_check_branch
          %373 = sbr.rel (%p371) target = $region44
        $region43: #{tpu_custom_call.1} parent=39 // pred_region
          %374 = vst [vmem:[#allocation2] sm:$0xff] 0.0
          %375 = vst [vmem:[#allocation2 + $0x8] sm:$0xff] 0.0
          %376 = vst [vmem:[#allocation2 + $0x10] sm:$0xff] 0.0
          %377 = vst [vmem:[#allocation2 + $0x18] sm:$0xff] 0.0
          %v378 = vlaneseq
          %vm379 = vcmp.ge.s32.totalorder %v378, 0
          %vm380 = vcmp.lt.s32.totalorder %v378, 256
          %vm381 = vmand %vm379, %vm380
          %382 = vst.msk [vmem:[#allocation3] sm:$0x3] %vm381, -inf
          %383 = vst.msk [vmem:[#allocation4] sm:$0x3] %vm381, 0.0
        $region44: #{tpu_custom_call.1} parent=39 // pred_fallthru
          _
        %v384 = vld [vmem:[%s347] sm:$0xff]
        %v385 = vld [vmem:[%s347 + $0x8] sm:$0xff]
        %v386 = vld [vmem:[%s347 + $0x10] sm:$0xff]
        %v387 = vld [vmem:[%s347 + $0x18] sm:$0xff]
        %v388 = vld [vmem:[%s347 + $0x20] sm:$0xff]
        %v389 = vld [vmem:[%s347 + $0x28] sm:$0xff]
        %v390 = vld [vmem:[%s347 + $0x30] sm:$0xff]
        %v391 = vld [vmem:[%s347 + $0x38] sm:$0xff]
        %v392 = vld [vmem:[%s347 + $0x40] sm:$0xff]
        %v393 = vld [vmem:[%s347 + $0x48] sm:$0xff]
        %v394 = vld [vmem:[%s347 + $0x50] sm:$0xff]
        %v395 = vld [vmem:[%s347 + $0x58] sm:$0xff]
        %v396 = vld [vmem:[%s347 + $0x60] sm:$0xff]
        %v397 = vld [vmem:[%s347 + $0x68] sm:$0xff]
        %v398 = vld [vmem:[%s347 + $0x70] sm:$0xff]
        %v399 = vld [vmem:[%s347 + $0x78] sm:$0xff]
        %v400 = vld [vmem:[%s347 + $0x80] sm:$0xff]
        %v401 = vld [vmem:[%s347 + $0x88] sm:$0xff]
        %v402 = vld [vmem:[%s347 + $0x90] sm:$0xff]
        %v403 = vld [vmem:[%s347 + $0x98] sm:$0xff]
        %v404 = vld [vmem:[%s347 + $0xa0] sm:$0xff]
        %v405 = vld [vmem:[%s347 + $0xa8] sm:$0xff]
        %v406 = vld [vmem:[%s347 + $0xb0] sm:$0xff]
        %v407 = vld [vmem:[%s347 + $0xb8] sm:$0xff]
        %v408 = vld [vmem:[%s347 + $0xc0] sm:$0xff]
        %v409 = vld [vmem:[%s347 + $0xc8] sm:$0xff]
        %v410 = vld [vmem:[%s347 + $0xd0] sm:$0xff]
        %v411 = vld [vmem:[%s347 + $0xd8] sm:$0xff]
        %v412 = vld [vmem:[%s347 + $0xe0] sm:$0xff]
        %v413 = vld [vmem:[%s347 + $0xe8] sm:$0xff]
        %v414 = vld [vmem:[%s347 + $0xf0] sm:$0xff]
        %v415 = vld [vmem:[%s347 + $0xf8] sm:$0xff]
        %v416 = vld [vmem:[%s337] sm:$0xf]
        %v419 = vunpack.c.l.s4 1983009808
        %v420 = vunpack.c.0.s8 %v419
        %v421 = vlaneseq
        %v422 = vshrl.u32 %v421, 7
        %v423 = vsub.s32 %v420, %v422
        %v424 = vrot.slane %v416, %v423
        %v425 = vcombine.high %v424, %v424
        %vm426 = vcmask 15360
        %v428 = vsel %vm426, %v384, 0
        %v431 = vsel %vm426, %v385, 0
        %v434 = vsel %vm426, %v386, 0
        %v437 = vsel %vm426, %v387, 0
        %v440 = vsel %vm426, %v388, 0
        %v443 = vsel %vm426, %v389, 0
        %v446 = vsel %vm426, %v390, 0
        %v449 = vsel %vm426, %v391, 0
        %v452 = vsel %vm426, %v392, 0
        %v455 = vsel %vm426, %v393, 0
        %v458 = vsel %vm426, %v394, 0
        %v461 = vsel %vm426, %v395, 0
        %v464 = vsel %vm426, %v396, 0
        %v467 = vsel %vm426, %v397, 0
        %v470 = vsel %vm426, %v398, 0
        %v473 = vsel %vm426, %v399, 0
        %v476 = vsel %vm426, %v400, 0
        %v479 = vsel %vm426, %v401, 0
        %v482 = vsel %vm426, %v402, 0
        %v485 = vsel %vm426, %v403, 0
        %v488 = vsel %vm426, %v404, 0
        %v491 = vsel %vm426, %v405, 0
        %v494 = vsel %vm426, %v406, 0
        %v497 = vsel %vm426, %v407, 0
        %v500 = vsel %vm426, %v408, 0
        %v503 = vsel %vm426, %v409, 0
        %v506 = vsel %vm426, %v410, 0
        %v509 = vsel %vm426, %v411, 0
        %v512 = vsel %vm426, %v412, 0
        %v515 = vsel %vm426, %v413, 0
        %v518 = vsel %vm426, %v414, 0
        %v521 = vsel %vm426, %v415, 0
        %vm523 = vcmask 1041408
        %v524 = vsel %vm523, %v424, 0
        %v526 = vsel %vm523, %v425, 0
        %528 = vmatprep.subr.mxu0 %v526
        %529 = vmatpush1.msra.mxu0 %v524
        %530 = vmatprep.subr.mxu0 0.0
        %531 = vmatpush1.msra.mxu0 0.0
        %532 = vmatprep.subr.mxu0 0.0
        %533 = vmatpush1.msra.mxu0 0.0
        %534 = vmatprep.subr.mxu0 0.0
        %535 = vmatpush1.msra.mxu0 0.0
        %536 = vmatprep.subr.mxu0 0.0
        %537 = vmatpush1.msra.mxu0 0.0
        %538 = vmatprep.subr.mxu0 0.0
        %539 = vmatpush1.msra.mxu0 0.0
        %540 = vmatprep.subr.mxu0 0.0
        %541 = vmatpush1.msra.mxu0 0.0
        %542 = vmatprep.subr.mxu0 0.0
        %543 = vmatpush1.msra.mxu0 0.0
        %544 = vmatprep.subr.mxu0 0.0
        %545 = vmatpush1.msra.mxu0 0.0
        %546 = vmatprep.subr.mxu0 0.0
        %547 = vmatpush1.msra.mxu0 0.0
        %548 = vmatprep.subr.mxu0 0.0
        %549 = vmatpush1.msra.mxu0 0.0
        %550 = vmatprep.subr.mxu0 0.0
        %551 = vmatpush1.msra.mxu0 0.0
        %552 = vmatprep.subr.mxu0 0.0
        %553 = vmatpush1.msra.mxu0 0.0
        %554 = vmatprep.subr.mxu0 0.0
        %555 = vmatpush1.msra.mxu0 0.0
        %556 = vmatprep.subr.mxu0 0.0
        %557 = vmatpush1.msra.mxu0 0.0
        %558 = vmatprep.subr.mxu0 0.0
        %559 = vmatpush1.msra.mxu0 0.0
        %560 = vmatprep.subr.mxu0 0.0
        %561 = vmatpush1.msra.mxu0 0.0
        %562 = vmatprep.subr.mxu0 0.0
        %563 = vmatpush1.msra.mxu0 0.0
        %564 = vmatprep.subr.mxu0 0.0
        %565 = vmatpush1.msra.mxu0 0.0
        %566 = vmatprep.subr.mxu0 0.0
        %567 = vmatpush1.msra.mxu0 0.0
        %568 = vmatprep.subr.mxu0 0.0
        %569 = vmatpush1.msra.mxu0 0.0
        %570 = vmatprep.subr.mxu0 0.0
        %571 = vmatpush1.msra.mxu0 0.0
        %572 = vmatprep.subr.mxu0 0.0
        %573 = vmatpush1.msra.mxu0 0.0
        %574 = vmatprep.subr.mxu0 0.0
        %575 = vmatpush1.msra.mxu0 0.0
        %576 = vmatprep.subr.mxu0 0.0
        %577 = vmatpush1.msra.mxu0 0.0
        %578 = vmatprep.subr.mxu0 0.0
        %579 = vmatpush1.msra.mxu0 0.0
        %580 = vmatprep.subr.mxu0 0.0
        %581 = vmatpush1.msra.mxu0 0.0
        %582 = vmatprep.subr.mxu0 0.0
        %583 = vmatpush1.msra.mxu0 0.0
        %584 = vmatprep.subr.mxu0 0.0
        %585 = vmatpush1.msra.mxu0 0.0
        %586 = vmatprep.subr.mxu0 0.0
        %587 = vmatpush1.msra.mxu0 0.0
        %588 = vmatprep.subr.mxu0 0.0
        %589 = vmatpush1.msra.mxu0 0.0
        %590 = vmatprep.subr.mxu0 0.0
        %591 = vmatpush1.msra.mxu0 0.0
        %592 = vmatprep.mubr.f32.mxu0 0.0
        %593 = vmatmul.mubr.f32.gmra.mrb[0].mxu0 %v428
        %v594 = vpop.f32.mrb[0].mxu0
        %v595 = vadd.f32 0.0, %v594
        %v596 = vpop.f32.mrb[0].mxu0
        %v597 = vadd.f32 0.0, %v596
        %598 = vmatprep.mubr.f32.mxu0 0.0
        %599 = vmatmul.mubr.f32.gmra.mrb[0].mxu0 %v431
        %v600 = vpop.f32.mrb[0].mxu0
        %v601 = vadd.f32 0.0, %v600
        %v602 = vpop.f32.mrb[0].mxu0
        %v603 = vadd.f32 0.0, %v602
        %604 = vmatprep.mubr.f32.mxu0 0.0
        %605 = vmatmul.mubr.f32.gmra.mrb[0].mxu0 %v434
        %v606 = vpop.f32.mrb[0].mxu0
        %v607 = vadd.f32 0.0, %v606
        %v608 = vpop.f32.mrb[0].mxu0
        %v609 = vadd.f32 0.0, %v608
        %610 = vmatprep.mubr.f32.mxu0 0.0
        %611 = vmatmul.mubr.f32.gmra.mrb[0].mxu0 %v437
        %v612 = vpop.f32.mrb[0].mxu0
        %v613 = vadd.f32 0.0, %v612
        %v614 = vpop.f32.mrb[0].mxu0
        %v615 = vadd.f32 0.0, %v614
        %616 = vmatprep.mubr.f32.mxu0 0.0
        %617 = vmatmul.mubr.f32.gmra.mrb[0].mxu0 %v440
        %v618 = vpop.f32.mrb[0].mxu0
        %v619 = vadd.f32 0.0, %v618
        %v620 = vpop.f32.mrb[0].mxu0
        %v621 = vadd.f32 0.0, %v620
        %622 = vmatprep.mubr.f32.mxu0 0.0
        %623 = vmatmul.mubr.f32.gmra.mrb[0].mxu0 %v443
        %v624 = vpop.f32.mrb[0].mxu0
        %v625 = vadd.f32 0.0, %v624
        %v626 = vpop.f32.mrb[0].mxu0
        %v627 = vadd.f32 0.0, %v626
        %628 = vmatprep.mubr.f32.mxu0 0.0
        %629 = vmatmul.mubr.f32.gmra.mrb[0].mxu0 %v446
        %v630 = vpop.f32.mrb[0].mxu0
        %v631 = vadd.f32 0.0, %v630
        %v632 = vpop.f32.mrb[0].mxu0
        %v633 = vadd.f32 0.0, %v632
        %634 = vmatprep.mubr.f32.mxu0 0.0
        %635 = vmatmul.mubr.f32.gmra.mrb[0].mxu0 %v449
        %v636 = vpop.f32.mrb[0].mxu0
        %v637 = vadd.f32 0.0, %v636
        %v638 = vpop.f32.mrb[0].mxu0
        %v639 = vadd.f32 0.0, %v638
        %640 = vmatprep.mubr.f32.mxu0 0.0
        %641 = vmatmul.mubr.f32.gmra.mrb[0].mxu0 %v452
        %v642 = vpop.f32.mrb[0].mxu0
        %v643 = vadd.f32 0.0, %v642
        %v644 = vpop.f32.mrb[0].mxu0
        %v645 = vadd.f32 0.0, %v644
        %646 = vmatprep.mubr.f32.mxu0 0.0
        %647 = vmatmul.mubr.f32.gmra.mrb[0].mxu0 %v455
        %v648 = vpop.f32.mrb[0].mxu0
        %v649 = vadd.f32 0.0, %v648
        %v650 = vpop.f32.mrb[0].mxu0
        %v651 = vadd.f32 0.0, %v650
        %652 = vmatprep.mubr.f32.mxu0 0.0
        %653 = vmatmul.mubr.f32.gmra.mrb[0].mxu0 %v458
        %v654 = vpop.f32.mrb[0].mxu0
        %v655 = vadd.f32 0.0, %v654
        %v656 = vpop.f32.mrb[0].mxu0
        %v657 = vadd.f32 0.0, %v656
        %658 = vmatprep.mubr.f32.mxu0 0.0
        %659 = vmatmul.mubr.f32.gmra.mrb[0].mxu0 %v461
        %v660 = vpop.f32.mrb[0].mxu0
        %v661 = vadd.f32 0.0, %v660
        %v662 = vpop.f32.mrb[0].mxu0
        %v663 = vadd.f32 0.0, %v662
        %664 = vmatprep.mubr.f32.mxu0 0.0
        %665 = vmatmul.mubr.f32.gmra.mrb[0].mxu0 %v464
        %v666 = vpop.f32.mrb[0].mxu0
        %v667 = vadd.f32 0.0, %v666
        %v668 = vpop.f32.mrb[0].mxu0
        %v669 = vadd.f32 0.0, %v668
        %670 = vmatprep.mubr.f32.mxu0 0.0
        %671 = vmatmul.mubr.f32.gmra.mrb[0].mxu0 %v467
        %v672 = vpop.f32.mrb[0].mxu0
        %v673 = vadd.f32 0.0, %v672
        %v674 = vpop.f32.mrb[0].mxu0
        %v675 = vadd.f32 0.0, %v674
        %676 = vmatprep.mubr.f32.mxu0 0.0
        %677 = vmatmul.mubr.f32.gmra.mrb[0].mxu0 %v470
        %v678 = vpop.f32.mrb[0].mxu0
        %v679 = vadd.f32 0.0, %v678
        %v680 = vpop.f32.mrb[0].mxu0
        %v681 = vadd.f32 0.0, %v680
        %682 = vmatprep.mubr.f32.mxu0 0.0
        %683 = vmatmul.mubr.f32.gmra.mrb[0].mxu0 %v473
        %v684 = vpop.f32.mrb[0].mxu0
        %v685 = vadd.f32 0.0, %v684
        %v686 = vpop.f32.mrb[0].mxu0
        %v687 = vadd.f32 0.0, %v686
        %688 = vmatprep.mubr.f32.mxu0 0.0
        %689 = vmatmul.mubr.f32.gmra.mrb[0].mxu0 %v476
        %v690 = vpop.f32.mrb[0].mxu0
        %v691 = vadd.f32 0.0, %v690
        %v692 = vpop.f32.mrb[0].mxu0
        %v693 = vadd.f32 0.0, %v692
        %694 = vmatprep.mubr.f32.mxu0 0.0
        %695 = vmatmul.mubr.f32.gmra.mrb[0].mxu0 %v479
        %v696 = vpop.f32.mrb[0].mxu0
        %v697 = vadd.f32 0.0, %v696
        %v698 = vpop.f32.mrb[0].mxu0
        %v699 = vadd.f32 0.0, %v698
        %700 = vmatprep.mubr.f32.mxu0 0.0
        %701 = vmatmul.mubr.f32.gmra.mrb[0].mxu0 %v482
        %v702 = vpop.f32.mrb[0].mxu0
        %v703 = vadd.f32 0.0, %v702
        %v704 = vpop.f32.mrb[0].mxu0
        %v705 = vadd.f32 0.0, %v704
        %706 = vmatprep.mubr.f32.mxu0 0.0
        %707 = vmatmul.mubr.f32.gmra.mrb[0].mxu0 %v485
        %v708 = vpop.f32.mrb[0].mxu0
        %v709 = vadd.f32 0.0, %v708
        %v710 = vpop.f32.mrb[0].mxu0
        %v711 = vadd.f32 0.0, %v710
        %712 = vmatprep.mubr.f32.mxu0 0.0
        %713 = vmatmul.mubr.f32.gmra.mrb[0].mxu0 %v488
        %v714 = vpop.f32.mrb[0].mxu0
        %v715 = vadd.f32 0.0, %v714
        %v716 = vpop.f32.mrb[0].mxu0
        %v717 = vadd.f32 0.0, %v716
        %718 = vmatprep.mubr.f32.mxu0 0.0
        %719 = vmatmul.mubr.f32.gmra.mrb[0].mxu0 %v491
        %v720 = vpop.f32.mrb[0].mxu0
        %v721 = vadd.f32 0.0, %v720
        %v722 = vpop.f32.mrb[0].mxu0
        %v723 = vadd.f32 0.0, %v722
        %724 = vmatprep.mubr.f32.mxu0 0.0
        %725 = vmatmul.mubr.f32.gmra.mrb[0].mxu0 %v494
        %v726 = vpop.f32.mrb[0].mxu0
        %v727 = vadd.f32 0.0, %v726
        %v728 = vpop.f32.mrb[0].mxu0
        %v729 = vadd.f32 0.0, %v728
        %730 = vmatprep.mubr.f32.mxu0 0.0
        %731 = vmatmul.mubr.f32.gmra.mrb[0].mxu0 %v497
        %v732 = vpop.f32.mrb[0].mxu0
        %v733 = vadd.f32 0.0, %v732
        %v734 = vpop.f32.mrb[0].mxu0
        %v735 = vadd.f32 0.0, %v734
        %736 = vmatprep.mubr.f32.mxu0 0.0
        %737 = vmatmul.mubr.f32.gmra.mrb[0].mxu0 %v500
        %v738 = vpop.f32.mrb[0].mxu0
        %v739 = vadd.f32 0.0, %v738
        %v740 = vpop.f32.mrb[0].mxu0
        %v741 = vadd.f32 0.0, %v740
        %742 = vmatprep.mubr.f32.mxu0 0.0
        %743 = vmatmul.mubr.f32.gmra.mrb[0].mxu0 %v503
        %v744 = vpop.f32.mrb[0].mxu0
        %v745 = vadd.f32 0.0, %v744
        %v746 = vpop.f32.mrb[0].mxu0
        %v747 = vadd.f32 0.0, %v746
        %748 = vmatprep.mubr.f32.mxu0 0.0
        %749 = vmatmul.mubr.f32.gmra.mrb[0].mxu0 %v506
        %v750 = vpop.f32.mrb[0].mxu0
        %v751 = vadd.f32 0.0, %v750
        %v752 = vpop.f32.mrb[0].mxu0
        %v753 = vadd.f32 0.0, %v752
        %754 = vmatprep.mubr.f32.mxu0 0.0
        %755 = vmatmul.mubr.f32.gmra.mrb[0].mxu0 %v509
        %v756 = vpop.f32.mrb[0].mxu0
        %v757 = vadd.f32 0.0, %v756
        %v758 = vpop.f32.mrb[0].mxu0
        %v759 = vadd.f32 0.0, %v758
        %760 = vmatprep.mubr.f32.mxu0 0.0
        %761 = vmatmul.mubr.f32.gmra.mrb[0].mxu0 %v512
        %v762 = vpop.f32.mrb[0].mxu0
        %v763 = vadd.f32 0.0, %v762
        %v764 = vpop.f32.mrb[0].mxu0
        %v765 = vadd.f32 0.0, %v764
        %766 = vmatprep.mubr.f32.mxu0 0.0
        %767 = vmatmul.mubr.f32.gmra.mrb[0].mxu0 %v515
        %v768 = vpop.f32.mrb[0].mxu0
        %v769 = vadd.f32 0.0, %v768
        %v770 = vpop.f32.mrb[0].mxu0
        %v771 = vadd.f32 0.0, %v770
        %772 = vmatprep.mubr.f32.mxu0 0.0
        %773 = vmatmul.mubr.f32.gmra.mrb[0].mxu0 %v518
        %v774 = vpop.f32.mrb[0].mxu0
        %v775 = vadd.f32 0.0, %v774
        %v776 = vpop.f32.mrb[0].mxu0
        %v777 = vadd.f32 0.0, %v776
        %778 = vmatprep.mubr.f32.mxu0 0.0
        %779 = vmatmul.mubr.f32.gmra.mrb[0].mxu0 %v521
        %v780 = vpop.f32.mrb[0].mxu0
        %v781 = vadd.f32 0.0, %v780
        %v782 = vpop.f32.mrb[0].mxu0
        %v783 = vadd.f32 0.0, %v782
        %784 = vdwg.mxu0
        %v785 = vld [vmem:[#allocation3] sm:$0x3]
        %v786 = vmax.f32 %v595, %v607
        %v787 = vmax.f32 %v601, %v613
        %v788 = vmax.f32 %v786, %v619
        %v789 = vmax.f32 %v787, %v625
        %v790 = vmax.f32 %v788, %v631
        %v791 = vmax.f32 %v789, %v637
        %v792 = vmax.f32 %v790, %v643
        %v793 = vmax.f32 %v791, %v649
        %v794 = vmax.f32 %v792, %v655
        %v795 = vmax.f32 %v793, %v661
        %v796 = vmax.f32 %v794, %v667
        %v797 = vmax.f32 %v795, %v673
        %v798 = vmax.f32 %v796, %v679
        %v799 = vmax.f32 %v797, %v685
        %v800 = vmax.f32 %v798, %v691
        %v801 = vmax.f32 %v799, %v697
        %v802 = vmax.f32 %v800, %v703
        %v803 = vmax.f32 %v801, %v709
        %v804 = vmax.f32 %v802, %v715
        %v805 = vmax.f32 %v803, %v721
        %v806 = vmax.f32 %v804, %v727
        %v807 = vmax.f32 %v805, %v733
        %v808 = vmax.f32 %v806, %v739
        %v809 = vmax.f32 %v807, %v745
        %v810 = vmax.f32 %v808, %v751
        %v811 = vmax.f32 %v809, %v757
        %v812 = vmax.f32 %v810, %v763
        %v813 = vmax.f32 %v811, %v769
        %v814 = vmax.f32 %v812, %v775
        %v815 = vmax.f32 %v813, %v781
        %v816 = vmax.f32 %v814, %v815
        %v817 = vrot.slane %v816, 4
        %v818 = vmax.f32 %v816, %v817
        %v819 = vrot.slane %v818, 2
        %v820 = vmax.f32 %v818, %v819
        %v821 = vrot.slane %v820, 1
        %v822 = vmax.f32 %v820, %v821
        %v823 = vmax.f32 %v597, %v609
        %v824 = vmax.f32 %v603, %v615
        %v825 = vmax.f32 %v823, %v621
        %v826 = vmax.f32 %v824, %v627
        %v827 = vmax.f32 %v825, %v633
        %v828 = vmax.f32 %v826, %v639
        %v829 = vmax.f32 %v827, %v645
        %v830 = vmax.f32 %v828, %v651
        %v831 = vmax.f32 %v829, %v657
        %v832 = vmax.f32 %v830, %v663
        %v833 = vmax.f32 %v831, %v669
        %v834 = vmax.f32 %v832, %v675
        %v835 = vmax.f32 %v833, %v681
        %v836 = vmax.f32 %v834, %v687
        %v837 = vmax.f32 %v835, %v693
        %v838 = vmax.f32 %v836, %v699
        %v839 = vmax.f32 %v837, %v705
        %v840 = vmax.f32 %v838, %v711
        %v841 = vmax.f32 %v839, %v717
        %v842 = vmax.f32 %v840, %v723
        %v843 = vmax.f32 %v841, %v729
        %v844 = vmax.f32 %v842, %v735
        %v845 = vmax.f32 %v843, %v741
        %v846 = vmax.f32 %v844, %v747
        %v847 = vmax.f32 %v845, %v753
        %v848 = vmax.f32 %v846, %v759
        %v849 = vmax.f32 %v847, %v765
        %v850 = vmax.f32 %v848, %v771
        %v851 = vmax.f32 %v849, %v777
        %v852 = vmax.f32 %v850, %v783
        %v853 = vmax.f32 %v851, %v852
        %v854 = vrot.slane %v853, 4
        %v855 = vmax.f32 %v853, %v854
        %v856 = vrot.slane %v855, 2
        %v857 = vmax.f32 %v855, %v856
        %v858 = vrot.slane %v857, 1
        %v859 = vmax.f32 %v857, %v858
        %v862 = vcombine.low %v822, %v859
        %v864 = vunpack.c.l.s4 1966171168
        %v865 = vunpack.c.0.s8 %v864
        %v866 = vlaneseq
        %v867 = vshrl.u32 %v866, 7
        %v868 = vsub.s32 %v865, %v867
        %v869 = vrot.slane %v862, %v868
        %v871 = vunpack.c.l.s4 1966171168
        %v872 = vunpack.c.0.s8 %v871
        %v873 = vlaneseq
        %v874 = vshrl.u32 %v873, 7
        %v875 = vsub.s32 %v872, %v874
        %v876 = vrot.slane %v869, %v875
        %v878 = vmax.f32 %v785, %v876
        %v879 = vsub.f32 %v785, %v878
        %v880 = vmul.f32 %v879, 1.442695
        %v881 = vpow.pop %v880
        %v883 = vlaneseq
        %v884 = vshrl.u32 %v883, 7
        %v885 = vsub.s32 0, %v884
        %v886 = vrot.slane %v878, %v885
        %v887 = vlaneseq
        %v888 = vshrl.u32 %v887, 7
        %v889 = vsub.s32 1, %v888
        %v890 = vrot.slane %v878, %v889
        %v893 = vsub.f32 %v595, %v886
        %v894 = vsub.f32 %v597, %v890
        %v895 = vsub.f32 %v601, %v886
        %v896 = vsub.f32 %v603, %v890
        %v897 = vsub.f32 %v607, %v886
        %v898 = vsub.f32 %v609, %v890
        %v899 = vsub.f32 %v613, %v886
        %v900 = vsub.f32 %v615, %v890
        %v901 = vsub.f32 %v619, %v886
        %v902 = vsub.f32 %v621, %v890
        %v903 = vsub.f32 %v625, %v886
        %v904 = vsub.f32 %v627, %v890
        %v905 = vsub.f32 %v631, %v886
        %v906 = vsub.f32 %v633, %v890
        %v907 = vsub.f32 %v637, %v886
        %v908 = vsub.f32 %v639, %v890
        %v909 = vsub.f32 %v643, %v886
        %v910 = vsub.f32 %v645, %v890
        %v911 = vsub.f32 %v649, %v886
        %v912 = vsub.f32 %v651, %v890
        %v913 = vsub.f32 %v655, %v886
        %v914 = vsub.f32 %v657, %v890
        %v915 = vsub.f32 %v661, %v886
        %v916 = vsub.f32 %v663, %v890
        %v917 = vsub.f32 %v667, %v886
        %v918 = vsub.f32 %v669, %v890
        %v919 = vsub.f32 %v673, %v886
        %v920 = vsub.f32 %v675, %v890
        %v921 = vsub.f32 %v679, %v886
        %v922 = vsub.f32 %v681, %v890
        %v923 = vsub.f32 %v685, %v886
        %v924 = vsub.f32 %v687, %v890
        %v925 = vsub.f32 %v691, %v886
        %v926 = vsub.f32 %v693, %v890
        %v927 = vsub.f32 %v697, %v886
        %v928 = vsub.f32 %v699, %v890
        %v929 = vsub.f32 %v703, %v886
        %v930 = vsub.f32 %v705, %v890
        %v931 = vsub.f32 %v709, %v886
        %v932 = vsub.f32 %v711, %v890
        %v933 = vsub.f32 %v715, %v886
        %v934 = vsub.f32 %v717, %v890
        %v935 = vsub.f32 %v721, %v886
        %v936 = vsub.f32 %v723, %v890
        %v937 = vsub.f32 %v727, %v886
        %v938 = vsub.f32 %v729, %v890
        %v939 = vsub.f32 %v733, %v886
        %v940 = vsub.f32 %v735, %v890
        %v941 = vsub.f32 %v739, %v886
        %v942 = vsub.f32 %v741, %v890
        %v943 = vsub.f32 %v745, %v886
        %v944 = vsub.f32 %v747, %v890
        %v945 = vsub.f32 %v751, %v886
        %v946 = vsub.f32 %v753, %v890
        %v947 = vsub.f32 %v757, %v886
        %v948 = vsub.f32 %v759, %v890
        %v949 = vsub.f32 %v763, %v886
        %v950 = vsub.f32 %v765, %v890
        %v951 = vsub.f32 %v769, %v886
        %v952 = vsub.f32 %v771, %v890
        %v953 = vsub.f32 %v775, %v886
        %v954 = vsub.f32 %v777, %v890
        %v955 = vsub.f32 %v781, %v886
        %v956 = vsub.f32 %v783, %v890
        %v957 = vmul.f32 %v893, 1.442695
        %v958 = vpow.pop %v957
        %v959 = vmul.f32 %v894, 1.442695
        %v960 = vpow.pop %v959
        %v961 = vmul.f32 %v895, 1.442695
        %v962 = vpow.pop %v961
        %v963 = vmul.f32 %v896, 1.442695
        %v964 = vpow.pop %v963
        %v965 = vmul.f32 %v897, 1.442695
        %v966 = vpow.pop %v965
        %v967 = vmul.f32 %v898, 1.442695
        %v968 = vpow.pop %v967
        %v969 = vmul.f32 %v899, 1.442695
        %v970 = vpow.pop %v969
        %v971 = vmul.f32 %v900, 1.442695
        %v972 = vpow.pop %v971
        %v973 = vmul.f32 %v901, 1.442695
        %v974 = vpow.pop %v973
        %v975 = vmul.f32 %v902, 1.442695
        %v976 = vpow.pop %v975
        %v977 = vmul.f32 %v903, 1.442695
        %v978 = vpow.pop %v977
        %v979 = vmul.f32 %v904, 1.442695
        %v980 = vpow.pop %v979
        %v981 = vmul.f32 %v905, 1.442695
        %v982 = vpow.pop %v981
        %v983 = vmul.f32 %v906, 1.442695
        %v984 = vpow.pop %v983
        %v985 = vmul.f32 %v907, 1.442695
        %v986 = vpow.pop %v985
        %v987 = vmul.f32 %v908, 1.442695
        %v988 = vpow.pop %v987
        %v989 = vmul.f32 %v909, 1.442695
        %v990 = vpow.pop %v989
        %v991 = vmul.f32 %v910, 1.442695
        %v992 = vpow.pop %v991
        %v993 = vmul.f32 %v911, 1.442695
        %v994 = vpow.pop %v993
        %v995 = vmul.f32 %v912, 1.442695
        %v996 = vpow.pop %v995
        %v997 = vmul.f32 %v913, 1.442695
        %v998 = vpow.pop %v997
        %v999 = vmul.f32 %v914, 1.442695
        %v1000 = vpow.pop %v999
        %v1001 = vmul.f32 %v915, 1.442695
        %v1002 = vpow.pop %v1001
        %v1003 = vmul.f32 %v916, 1.442695
        %v1004 = vpow.pop %v1003
        %v1005 = vmul.f32 %v917, 1.442695
        %v1006 = vpow.pop %v1005
        %v1007 = vmul.f32 %v918, 1.442695
        %v1008 = vpow.pop %v1007
        %v1009 = vmul.f32 %v919, 1.442695
        %v1010 = vpow.pop %v1009
        %v1011 = vmul.f32 %v920, 1.442695
        %v1012 = vpow.pop %v1011
        %v1013 = vmul.f32 %v921, 1.442695
        %v1014 = vpow.pop %v1013
        %v1015 = vmul.f32 %v922, 1.442695
        %v1016 = vpow.pop %v1015
        %v1017 = vmul.f32 %v923, 1.442695
        %v1018 = vpow.pop %v1017
        %v1019 = vmul.f32 %v924, 1.442695
        %v1020 = vpow.pop %v1019
        %v1021 = vmul.f32 %v925, 1.442695
        %v1022 = vpow.pop %v1021
        %v1023 = vmul.f32 %v926, 1.442695
        %v1024 = vpow.pop %v1023
        %v1025 = vmul.f32 %v927, 1.442695
        %v1026 = vpow.pop %v1025
        %v1027 = vmul.f32 %v928, 1.442695
        %v1028 = vpow.pop %v1027
        %v1029 = vmul.f32 %v929, 1.442695
        %v1030 = vpow.pop %v1029
        %v1031 = vmul.f32 %v930, 1.442695
        %v1032 = vpow.pop %v1031
        %v1033 = vmul.f32 %v931, 1.442695
        %v1034 = vpow.pop %v1033
        %v1035 = vmul.f32 %v932, 1.442695
        %v1036 = vpow.pop %v1035
        %v1037 = vmul.f32 %v933, 1.442695
        %v1038 = vpow.pop %v1037
        %v1039 = vmul.f32 %v934, 1.442695
        %v1040 = vpow.pop %v1039
        %v1041 = vmul.f32 %v935, 1.442695
        %v1042 = vpow.pop %v1041
        %v1043 = vmul.f32 %v936, 1.442695
        %v1044 = vpow.pop %v1043
        %v1045 = vmul.f32 %v937, 1.442695
        %v1046 = vpow.pop %v1045
        %v1047 = vmul.f32 %v938, 1.442695
        %v1048 = vpow.pop %v1047
        %v1049 = vmul.f32 %v939, 1.442695
        %v1050 = vpow.pop %v1049
        %v1051 = vmul.f32 %v940, 1.442695
        %v1052 = vpow.pop %v1051
        %v1053 = vmul.f32 %v941, 1.442695
        %v1054 = vpow.pop %v1053
        %v1055 = vmul.f32 %v942, 1.442695
        %v1056 = vpow.pop %v1055
        %v1057 = vmul.f32 %v943, 1.442695
        %v1058 = vpow.pop %v1057
        %v1059 = vmul.f32 %v944, 1.442695
        %v1060 = vpow.pop %v1059
        %v1061 = vmul.f32 %v945, 1.442695
        %v1062 = vpow.pop %v1061
        %v1063 = vmul.f32 %v946, 1.442695
        %v1064 = vpow.pop %v1063
        %v1065 = vmul.f32 %v947, 1.442695
        %v1066 = vpow.pop %v1065
        %v1067 = vmul.f32 %v948, 1.442695
        %v1068 = vpow.pop %v1067
        %v1069 = vmul.f32 %v949, 1.442695
        %v1070 = vpow.pop %v1069
        %v1071 = vmul.f32 %v950, 1.442695
        %v1072 = vpow.pop %v1071
        %v1073 = vmul.f32 %v951, 1.442695
        %v1074 = vpow.pop %v1073
        %v1075 = vmul.f32 %v952, 1.442695
        %v1076 = vpow.pop %v1075
        %v1077 = vmul.f32 %v953, 1.442695
        %v1078 = vpow.pop %v1077
        %v1079 = vmul.f32 %v954, 1.442695
        %v1080 = vpow.pop %v1079
        %v1081 = vmul.f32 %v955, 1.442695
        %v1082 = vpow.pop %v1081
        %v1083 = vmul.f32 %v956, 1.442695
        %v1084 = vpow.pop %v1083
        %v1085 = vld [vmem:[#allocation4] sm:$0x3]
        %v1086 = vmul.f32 %v881, %v1085
        %v1087 = vadd.f32 %v958, %v962
        %v1088 = vadd.f32 %v1087, %v966
        %v1089 = vadd.f32 %v1088, %v970
        %v1090 = vadd.f32 %v1089, %v974
        %v1091 = vadd.f32 %v1090, %v978
        %v1092 = vadd.f32 %v1091, %v982
        %v1093 = vadd.f32 %v1092, %v986
        %v1094 = vadd.f32 %v1093, %v990
        %v1095 = vadd.f32 %v1094, %v994
        %v1096 = vadd.f32 %v1095, %v998
        %v1097 = vadd.f32 %v1096, %v1002
        %v1098 = vadd.f32 %v1097, %v1006
        %v1099 = vadd.f32 %v1098, %v1010
        %v1100 = vadd.f32 %v1099, %v1014
        %v1101 = vadd.f32 %v1100, %v1018
        %v1102 = vadd.f32 %v1101, %v1022
        %v1103 = vadd.f32 %v1102, %v1026
        %v1104 = vadd.f32 %v1103, %v1030
        %v1105 = vadd.f32 %v1104, %v1034
        %v1106 = vadd.f32 %v1105, %v1038
        %v1107 = vadd.f32 %v1106, %v1042
        %v1108 = vadd.f32 %v1107, %v1046
        %v1109 = vadd.f32 %v1108, %v1050
        %v1110 = vadd.f32 %v1109, %v1054
        %v1111 = vadd.f32 %v1110, %v1058
        %v1112 = vadd.f32 %v1111, %v1062
        %v1113 = vadd.f32 %v1112, %v1066
        %v1114 = vadd.f32 %v1113, %v1070
        %v1115 = vadd.f32 %v1114, %v1074
        %v1116 = vadd.f32 %v1115, %v1078
        %v1117 = vadd.f32 %v1116, %v1082
        %v1118 = vrot.slane %v1117, 4
        %v1119 = vadd.f32 %v1117, %v1118
        %v1120 = vrot.slane %v1119, 2
        %v1121 = vadd.f32 %v1119, %v1120
        %v1122 = vrot.slane %v1121, 1
        %v1123 = vadd.f32 %v1121, %v1122
        %v1124 = vadd.f32 %v960, %v964
        %v1125 = vadd.f32 %v1124, %v968
        %v1126 = vadd.f32 %v1125, %v972
        %v1127 = vadd.f32 %v1126, %v976
        %v1128 = vadd.f32 %v1127, %v980
        %v1129 = vadd.f32 %v1128, %v984
        %v1130 = vadd.f32 %v1129, %v988
        %v1131 = vadd.f32 %v1130, %v992
        %v1132 = vadd.f32 %v1131, %v996
        %v1133 = vadd.f32 %v1132, %v1000
        %v1134 = vadd.f32 %v1133, %v1004
        %v1135 = vadd.f32 %v1134, %v1008
        %v1136 = vadd.f32 %v1135, %v1012
        %v1137 = vadd.f32 %v1136, %v1016
        %v1138 = vadd.f32 %v1137, %v1020
        %v1139 = vadd.f32 %v1138, %v1024
        %v1140 = vadd.f32 %v1139, %v1028
        %v1141 = vadd.f32 %v1140, %v1032
        %v1142 = vadd.f32 %v1141, %v1036
        %v1143 = vadd.f32 %v1142, %v1040
        %v1144 = vadd.f32 %v1143, %v1044
        %v1145 = vadd.f32 %v1144, %v1048
        %v1146 = vadd.f32 %v1145, %v1052
        %v1147 = vadd.f32 %v1146, %v1056
        %v1148 = vadd.f32 %v1147, %v1060
        %v1149 = vadd.f32 %v1148, %v1064
        %v1150 = vadd.f32 %v1149, %v1068
        %v1151 = vadd.f32 %v1150, %v1072
        %v1152 = vadd.f32 %v1151, %v1076
        %v1153 = vadd.f32 %v1152, %v1080
        %v1154 = vadd.f32 %v1153, %v1084
        %v1155 = vrot.slane %v1154, 4
        %v1156 = vadd.f32 %v1154, %v1155
        %v1157 = vrot.slane %v1156, 2
        %v1158 = vadd.f32 %v1156, %v1157
        %v1159 = vrot.slane %v1158, 1
        %v1160 = vadd.f32 %v1158, %v1159
        %v1163 = vcombine.low %v1123, %v1160
        %v1165 = vunpack.c.l.s4 1966171168
        %v1166 = vunpack.c.0.s8 %v1165
        %v1167 = vlaneseq
        %v1168 = vshrl.u32 %v1167, 7
        %v1169 = vsub.s32 %v1166, %v1168
        %v1170 = vrot.slane %v1163, %v1169
        %v1172 = vunpack.c.l.s4 1966171168
        %v1173 = vunpack.c.0.s8 %v1172
        %v1174 = vlaneseq
        %v1175 = vshrl.u32 %v1174, 7
        %v1176 = vsub.s32 %v1173, %v1175
        %v1177 = vrot.slane %v1170, %v1176
        %v1179 = vadd.f32 %v1086, %v1177
        %v1180 = vlaneseq
        %vm1181 = vcmp.ge.s32.totalorder %v1180, 0
        %vm1182 = vcmp.lt.s32.totalorder %v1180, 256
        %vm1183 = vmand %vm1181, %vm1182
        %1184 = vst.msk [vmem:[#allocation4] sm:$0x3] %vm1183, %v1179
        %v1185 = vld [vmem:[#allocation2] sm:$0xff]
        %v1186 = vld [vmem:[#allocation2 + $0x8] sm:$0xff]
        %v1187 = vld [vmem:[#allocation2 + $0x10] sm:$0xff]
        %v1188 = vld [vmem:[#allocation2 + $0x18] sm:$0xff]
        %v1190 = vlaneseq
        %v1191 = vshrl.u32 %v1190, 7
        %v1192 = vsub.s32 0, %v1191
        %v1193 = vrot.slane %v881, %v1192
        %v1194 = vlaneseq
        %v1195 = vshrl.u32 %v1194, 7
        %v1196 = vsub.s32 1, %v1195
        %v1197 = vrot.slane %v881, %v1196
        %v1200 = vmul.f32 %v1193, %v1185
        %v1201 = vmul.f32 %v1197, %v1186
        %v1202 = vmul.f32 %v1193, %v1187
        %v1203 = vmul.f32 %v1197, %v1188
        %v1204 = vld [vmem:[%s357] sm:$0xff]
        %v1205 = vld [vmem:[%s357 + $0x8] sm:$0xff]
        %v1206 = vld [vmem:[%s357 + $0x10] sm:$0xff]
        %v1207 = vld [vmem:[%s357 + $0x18] sm:$0xff]
        %1208 = vmatprep.subr.mxu0 %v960
        %1209 = vmatpush1.msra.mxu0 %v958
        %1210 = vmatprep.subr.mxu0 %v964
        %1211 = vmatpush1.msra.mxu0 %v962
        %1212 = vmatprep.subr.mxu0 %v968
        %1213 = vmatpush1.msra.mxu0 %v966
        %1214 = vmatprep.subr.mxu0 %v972
        %1215 = vmatpush1.msra.mxu0 %v970
        %1216 = vmatprep.subr.mxu0 %v976
        %1217 = vmatpush1.msra.mxu0 %v974
        %1218 = vmatprep.subr.mxu0 %v980
        %1219 = vmatpush1.msra.mxu0 %v978
        %1220 = vmatprep.subr.mxu0 %v984
        %1221 = vmatpush1.msra.mxu0 %v982
        %1222 = vmatprep.subr.mxu0 %v988
        %1223 = vmatpush1.msra.mxu0 %v986
        %1224 = vmatprep.subr.mxu0 %v992
        %1225 = vmatpush1.msra.mxu0 %v990
        %1226 = vmatprep.subr.mxu0 %v996
        %1227 = vmatpush1.msra.mxu0 %v994
        %1228 = vmatprep.subr.mxu0 %v1000
        %1229 = vmatpush1.msra.mxu0 %v998
        %1230 = vmatprep.subr.mxu0 %v1004
        %1231 = vmatpush1.msra.mxu0 %v1002
        %1232 = vmatprep.subr.mxu0 %v1008
        %1233 = vmatpush1.msra.mxu0 %v1006
        %1234 = vmatprep.subr.mxu0 %v1012
        %1235 = vmatpush1.msra.mxu0 %v1010
        %1236 = vmatprep.subr.mxu0 %v1016
        %1237 = vmatpush1.msra.mxu0 %v1014
        %1238 = vmatprep.subr.mxu0 %v1020
        %1239 = vmatpush1.msra.mxu0 %v1018
        %1240 = vmatprep.subr.mxu0 %v1024
        %1241 = vmatpush1.msra.mxu0 %v1022
        %1242 = vmatprep.subr.mxu0 %v1028
        %1243 = vmatpush1.msra.mxu0 %v1026
        %1244 = vmatprep.subr.mxu0 %v1032
        %1245 = vmatpush1.msra.mxu0 %v1030
        %1246 = vmatprep.subr.mxu0 %v1036
        %1247 = vmatpush1.msra.mxu0 %v1034
        %1248 = vmatprep.subr.mxu0 %v1040
        %1249 = vmatpush1.msra.mxu0 %v1038
        %1250 = vmatprep.subr.mxu0 %v1044
        %1251 = vmatpush1.msra.mxu0 %v1042
        %1252 = vmatprep.subr.mxu0 %v1048
        %1253 = vmatpush1.msra.mxu0 %v1046
        %1254 = vmatprep.subr.mxu0 %v1052
        %1255 = vmatpush1.msra.mxu0 %v1050
        %1256 = vmatprep.subr.mxu0 %v1056
        %1257 = vmatpush1.msra.mxu0 %v1054
        %1258 = vmatprep.subr.mxu0 %v1060
        %1259 = vmatpush1.msra.mxu0 %v1058
        %1260 = vmatprep.subr.mxu0 %v1064
        %1261 = vmatpush1.msra.mxu0 %v1062
        %1262 = vmatprep.subr.mxu0 %v1068
        %1263 = vmatpush1.msra.mxu0 %v1066
        %1264 = vmatprep.subr.mxu0 %v1072
        %1265 = vmatpush1.msra.mxu0 %v1070
        %1266 = vmatprep.subr.mxu0 %v1076
        %1267 = vmatpush1.msra.mxu0 %v1074
        %1268 = vmatprep.subr.mxu0 %v1080
        %1269 = vmatpush1.msra.mxu0 %v1078
        %1270 = vmatprep.subr.mxu0 %v1084
        %1271 = vmatpush1.msra.mxu0 %v1082
        %1272 = vmatprep.mubr.f32.mxu0 %v1205
        %1273 = vmatmul.mubr.f32.gmra.mrb[0].mxu0 %v1204
        %v1274 = vpop.f32.mrb[0].mxu0
        %v1275 = vadd.f32 0.0, %v1274
        %v1276 = vpop.f32.mrb[0].mxu0
        %v1277 = vadd.f32 0.0, %v1276
        %1278 = vmatprep.mubr.f32.mxu0 %v1207
        %1279 = vmatmul.mubr.f32.gmra.mrb[0].mxu0 %v1206
        %v1280 = vpop.f32.mrb[0].mxu0
        %v1281 = vadd.f32 0.0, %v1280
        %v1282 = vpop.f32.mrb[0].mxu0
        %v1283 = vadd.f32 0.0, %v1282
        %1284 = vdwg.mxu0
        %v1285 = vadd.f32 %v1200, %v1275
        %v1286 = vadd.f32 %v1201, %v1277
        %v1287 = vadd.f32 %v1202, %v1281
        %v1288 = vadd.f32 %v1203, %v1283
        %1289 = vst [vmem:[#allocation2] sm:$0xff] %v1285
        %1290 = vst [vmem:[#allocation2 + $0x8] sm:$0xff] %v1286
        %1291 = vst [vmem:[#allocation2 + $0x10] sm:$0xff] %v1287
        %1292 = vst [vmem:[#allocation2 + $0x18] sm:$0xff] %v1288
        %1293 = vst.msk [vmem:[#allocation3] sm:$0x3] %vm1183, %v878
        // Predicated region
        $region45: #{tpu_custom_call.1} parent=39 // pred_check
          %p1294 = pneg %p370
        $region46: #{tpu_custom_call.1} parent=39 // pred_check_branch
          %1296 = sbr.rel (%p1294) target = $region48
        $region47: #{tpu_custom_call.1} parent=39 // pred_region
          %s1297 = sld [smem:[#allocation5]]
          %v1298 = vld [vmem:[#allocation4] sm:$0x3]
          %v1299 = vrcp.pop %v1298
          %v1300 = vstv %s1297
          %v1301 = vmul.f32 %v1300, %v1299
          %v1302 = vld [vmem:[#allocation2] sm:$0xff]
          %v1303 = vld [vmem:[#allocation2 + $0x8] sm:$0xff]
          %v1304 = vld [vmem:[#allocation2 + $0x10] sm:$0xff]
          %v1305 = vld [vmem:[#allocation2 + $0x18] sm:$0xff]
          %v1307 = vlaneseq
          %v1308 = vshrl.u32 %v1307, 7
          %v1309 = vsub.s32 0, %v1308
          %v1310 = vrot.slane %v1301, %v1309
          %v1311 = vlaneseq
          %v1312 = vshrl.u32 %v1311, 7
          %v1313 = vsub.s32 1, %v1312
          %v1314 = vrot.slane %v1301, %v1313
          %v1317 = vmul.f32 %v1302, %v1310
          %v1318 = vmul.f32 %v1303, %v1314
          %v1319 = vmul.f32 %v1304, %v1310
          %v1320 = vmul.f32 %v1305, %v1314
          %v1321 = vld [vmem:[%s367] sm:$0xff]
          %v1322 = vld [vmem:[%s367 + $0x8] sm:$0xff]
          %v1323 = vld [vmem:[%s367 + $0x10] sm:$0xff]
          %v1324 = vld [vmem:[%s367 + $0x18] sm:$0xff]
          %v1325 = vmul.f32 %v1317, %v1321
          %v1326 = vmul.f32 %v1318, %v1322
          %v1327 = vmul.f32 %v1319, %v1323
          %v1328 = vmul.f32 %v1320, %v1324
          %1329 = vst [vmem:[%s328] sm:$0xff] %v1325
          %1330 = vst [vmem:[%s328 + $0x8] sm:$0xff] %v1326
          %1331 = vst [vmem:[%s328 + $0x10] sm:$0xff] %v1327
          %1332 = vst [vmem:[%s328 + $0x18] sm:$0xff] %v1328
        $region48: #{tpu_custom_call.1} parent=39 // pred_fallthru
          _
        %s1333 = sand.u32 %s182, 1
        %s1334 = scalar_lea.sflag [#allocation7], %s1333
        %s1335 = sand.u32 %s182, 1
        %s1336 = smul.addr %s1335, 32
        %s1337 = scalar_lea.vmem [#allocation6], %s1336
        // Predicated region
        $region49: #{tpu_custom_call.1} parent=39 // pred_check
          %p1338 = pneg %p192
        $region50: #{tpu_custom_call.1} parent=39 // pred_check_branch
          %1340 = sbr.rel (%p1338) target = $region52
        $region51: #{tpu_custom_call.1} parent=39 // pred_region
          %s1341 = smul.u32 2, %s26
          %s1343 = ssub.s32 512, 512
          %1344 = vsyncadd %s1334, %s1343
          %s1345 = smul.addr %s25, 4
          %s1346 = sadd.s32 %s1341, %s1345
          %s1347 = smul.addr %s1346, 128
          %s1348 = scalar_lea.hbm %s5, %s1347
          %s1349 = sshll.u32 %s1337, 4
          %s1350 = int_to_ptr.vmem [resolvable:$true] %s1349
          %1355 = dma.vmem_to_hbm [thread:$0]  %s1350, 512, %s1348, %s1334, 256, 256, 16
        $region52: #{tpu_custom_call.1} parent=39 // pred_fallthru
          _
      $region40: #{tpu_custom_call.1} parent=5 // pred_fallthru
        _
      %p1356 = scmp.le.s32.totalorder 2, %s15
      // Predicated region
      $region53: #{tpu_custom_call.1} parent=5 // pred_check
        %p1357 = pneg %p1356
      $region54: #{tpu_custom_call.1} parent=5 // pred_check_branch
        %1359 = sbr.rel (%p1357) target = $region56
      $region55: #{tpu_custom_call.1} parent=5 // pred_region
        %s1360 = ssub.s32 %s15, 2
        // Predicated region
        $region57: #{tpu_custom_call.1} parent=55 // pred_check
          %p1361 = pneg %p198
        $region58: #{tpu_custom_call.1} parent=55 // pred_check_branch
          %1363 = sbr.rel (%p1361) target = $region60
        $region59: #{tpu_custom_call.1} parent=55 // pred_region
          %s1364 = sand.u32 %s183, 1
          %s1365 = scalar_lea.sflag [#allocation7], %s1364
          %s1366 = sand.u32 %s183, 1
          %s1367 = smul.addr %s1366, 32
          %s1368 = scalar_lea.vmem [#allocation6], %s1367
          %1369 = dma.done %s1365, 512
        $region60: #{tpu_custom_call.1} parent=55 // pred_fallthru
          _
      $region56: #{tpu_custom_call.1} parent=5 // pred_fallthru
        _
    $region6: #{tpu_custom_call.1} parent=1 // loop_footer
      %s19 = sadd.s32 1, %s15
    $region7: #{tpu_custom_call.1} parent=1 // loop_footer_branch
      %14 = sbr.rel target = $region3
    $region8: #{tpu_custom_call.1} parent=1 // loop_exit
      _
    %1370 = vsyncpa [#allocation7], 1
    %s1371 = scalar_lea.sflag [#allocation7], 1
    %1372 = vsyncpa %s1371, 1

</llo_original>
